<compile_context>
chip_gen: v7x
topology: tpu7x:2x2x1
jax: 0.10.0
libtpu: 0.0.40
codegen_flags: <defaults>
</compile_context>

<pallas_src>
import math

import jax
import jax.numpy as jnp
import numpy as np
from jax import lax
from jax.experimental import pallas as pl
from jax.experimental.pallas import tpu as pltpu

EPS = 1e-5


# ---------------------------------------------------------------------------
# Host-built (prepare-time) constant operator matrices.
# ---------------------------------------------------------------------------
def _interp_matrix(n_in, n_out):
    """(n_out, n_in) bilinear interpolation weights, align_corners=True."""
    m = np.zeros((n_out, n_in), np.float32)
    if n_out == 1 or n_in == 1:
        m[:, 0] = 1.0
        return m
    scale = (n_in - 1) / (n_out - 1)
    for o in range(n_out):
        pos = o * scale
        i0 = min(max(int(np.floor(pos)), 0), n_in - 1)
        i1 = min(i0 + 1, n_in - 1)
        f = pos - i0
        m[o, i0] += 1.0 - f
        m[o, i1] += f
    return m


def _shift_matrix(h, dh):
    """(h, h) row-shift matrix: row r reads input row r + dh - 1 (zero at borders)."""
    s = np.zeros((h, h), np.float32)
    for r in range(h):
        src = r + dh - 1
        if 0 <= src < h:
            s[r, src] = 1.0
    return s


def _band_matrices(wt_hwio, w_out):
    """Fold horizontal taps + channel mixing of a 3x3 conv into band matrices.

    wt_hwio: (3, 3, cin, cout). Returns (3, w_out*cin, w_out*cout) with
      band[dh][(wi, ci), (wo, co)] = wt[dh, wi-wo+1, ci, co]  (0 outside band),
    so a lane-dense row (W*cin) @ band[dh] yields the dh-tap contribution
    (W*cout) with horizontal zero padding handled implicitly.
    """
    _, _, cin, cout = wt_hwio.shape
    sel = np.zeros((3, w_out, w_out), np.float32)       # sel[dw, wi, wo]
    for dw in range(3):
        for wo in range(w_out):
            wi = wo + dw - 1
            if 0 <= wi < w_out:
                sel[dw, wi, wo] = 1.0
    band = jnp.einsum("dij,hdco->hicjo", jnp.asarray(sel), wt_hwio)
    return band.reshape(3, w_out * cin, w_out * cout)


# ---------------------------------------------------------------------------
# Once-per-weight-update precompute (hoisted out of the forward, per review).
# ---------------------------------------------------------------------------
def prepare_spade_constants(params, x_shape, seg_shape):
    _, c, h, w = x_shape
    _, nc, sh, sw = seg_shape
    nhid = params["w_shared"].shape[-1]

    # Pad nhidden so W * nhidden is a multiple of 128 lanes (exact: the padded
    # channels get zero weights and zero bias).
    step = 128 // math.gcd(w, 128)
    nhid_pad = max(nhid, step * int(math.ceil(nhid / step)))
    pad = nhid_pad - nhid
    w_shared = jnp.pad(params["w_shared"], ((0, 0), (0, 0), (0, 0), (0, pad)))
    b_shared = jnp.pad(params["b_shared"], ((0, pad),))
    w_gamma = jnp.pad(params["w_gamma"], ((0, 0), (0, 0), (0, pad), (0, 0)))
    w_beta = jnp.pad(params["w_beta"], ((0, 0), (0, 0), (0, pad), (0, 0)))

    wc, wnh, swnc = w * c, w * nhid_pad, sw * nc

    # Shape-only operators (numpy).
    ry = _interp_matrix(sh, h)                                       # (h, sh)
    rx = _interp_matrix(sw, w)                                       # (w, sw)
    # L_cat: height upsample + vertical shift for the 3 taps, concatenated along K.
    l_cat = np.concatenate([_shift_matrix(h, d) @ ry for d in range(3)], axis=1)
    # Ex: width upsample of a lane-dense (.., sw*nc) row to (.., w*nc).
    ex = np.einsum("ow,cd->wcod", rx, np.eye(nc, dtype=np.float32)).reshape(swnc, w * nc)

    # Weight-dependent band matrices (tiny at toy W*channels; see TODO above).
    band_s = _band_matrices(w_shared, w)                             # (3, w*nc, wnh)
    rs = jnp.einsum("kn,dnm->dkm", jnp.asarray(ex), band_s)          # (3, swnc, wnh)
    rs_cat = jnp.concatenate([rs[0], rs[1], rs[2]], axis=1)          # (swnc, 3*wnh)
    band_g = _band_matrices(w_gamma, w)                              # (3, wnh, wc)
    band_b = _band_matrices(w_beta, w)
    wgb = jnp.concatenate([band_g, band_b], axis=2)                  # (3, wnh, 2*wc)
    wgb_stack = jnp.concatenate([wgb[0], wgb[1], wgb[2]], axis=0)    # (3*wnh, 2*wc)

    return {
        "l_cat": jnp.asarray(l_cat).astype(jnp.bfloat16),            # (h, 3*sh)
        "rs_cat": rs_cat.astype(jnp.bfloat16),                       # (swnc, 3*wnh)
        "wgb": wgb_stack.astype(jnp.bfloat16),                       # (3*wnh, 2*wc)
        "bias_s": jnp.tile(b_shared, w).reshape(1, wnh).astype(jnp.float32),
        "bias_gb": jnp.concatenate(
            [jnp.tile(params["b_gamma"], w),
             jnp.tile(params["b_beta"], w)]).reshape(1, 2 * wc).astype(jnp.float32),
    }


# ---------------------------------------------------------------------------
# Fused SPADE kernel: upsample + shared conv(+ReLU) + gamma/beta conv + modulate.
# Activations live as lane-dense (H, W*channels) rows; one grid step per image.
# ---------------------------------------------------------------------------
def spade_fused_kernel(x_ref, seg_ref, mean_ref, invstd_ref,
                       lcat_ref, rscat_ref, bs_ref, wgb_ref, bgb_ref, o_ref):
    f32 = jnp.float32
    bf16 = jnp.bfloat16
    h = o_ref.shape[1]
    wc = o_ref.shape[2]                      # W * norm_nc      (= 128 lanes)
    wnh = bs_ref.shape[1]                    # W * nhidden_pad  (= 128 lanes)

    # ---- shared conv: bilinear upsample + 3x3 conv + ReLU --------------------
    # Width upsample + horizontal taps + channel mix for all 3 vertical taps in
    # ONE matmul (taps concatenated along the output columns of Rs_cat)...
    t_cat = jnp.dot(seg_ref[0], rscat_ref[...], preferred_element_type=f32)    # (sh, 3*wnh)
    # ...then height upsample + vertical tap-sum in ONE matmul: restack the three
    # lane-aligned column blocks along K (rows) to match L_cat's column blocks.
    stacked_t = jnp.concatenate(
        [t_cat[:, 0 * wnh:1 * wnh],
         t_cat[:, 1 * wnh:2 * wnh],
         t_cat[:, 2 * wnh:3 * wnh]], axis=0).astype(bf16)                       # (3*sh, wnh)
    acc_a = jnp.dot(lcat_ref[...], stacked_t, preferred_element_type=f32)       # (h, wnh)
    actv = jnp.maximum(acc_a + bs_ref[...], 0.0)                                # bias + ReLU (f32)

    # ---- gamma & beta conv: ONE matmul (3 vertical taps stacked along K,
    # gamma/beta concatenated along N).  Vertical taps = sublane roll + border
    # mask on the XLU (replaces the old pure-permutation S-shift MXU matmuls).
    row = lax.broadcasted_iota(jnp.int32, (h, wnh), 0)
    up = jnp.where(row == 0, 0.0, pltpu.roll(actv, shift=1, axis=0))            # row r <- actv[r-1]
    dn = jnp.where(row == h - 1, 0.0, pltpu.roll(actv, shift=h - 1, axis=0))    # row r <- actv[r+1]
    shifted_cat = jnp.concatenate([up, actv, dn], axis=1).astype(bf16)          # (h, 3*wnh)
    gb = jnp.dot(shifted_cat, wgb_ref[...], preferred_element_type=f32) + bgb_ref[...]
    gamma = gb[:, :wc]                       # lane-aligned split at column W*C
    beta = gb[:, wc:]

    # ---- batch-norm normalize + SPADE modulation (f32 VPU) --------------------
    normalized = (x_ref[0] - mean_ref[...]) * invstd_ref[...]
    o_ref[0] = (normalized * (1.0 + gamma) + beta).astype(o_ref.dtype)


# ---------------------------------------------------------------------------
# Full SPADE forward (NCHW in / NCHW out, matching PyTorch).
# ---------------------------------------------------------------------------
def spade_forward(x_nchw, seg_nchw, consts):
    # NCHW -> NHWC -> lane-dense (H, W*C) rows.
    # TODO(synk): keep the model NHWC end-to-end in production to drop these transposes.
    x = jnp.transpose(x_nchw, (0, 2, 3, 1)).astype(jnp.float32)
    seg = jnp.transpose(seg_nchw, (0, 2, 3, 1)).astype(jnp.float32)
    n, h, w, c = x.shape
    _, sh, sw, nc = seg.shape
    wc, swnc = w * c, sw * nc
    wnh = consts["bias_s"].shape[1]

    # BatchNorm2d(affine=False) training-mode batch stats: single fused sum/sumsq
    # pass over x (tiny cross-batch reduction; fusing it into the kernel would
    # serialize the otherwise-parallel batch grid).
    cnt = n * h * w
    s1 = jnp.sum(x, axis=(0, 1, 2))
    s2 = jnp.sum(jnp.square(x), axis=(0, 1, 2))
    mean = s1 / cnt
    var = jnp.maximum(s2 / cnt - jnp.square(mean), 0.0)
    invstd = lax.rsqrt(var + EPS)
    mean_row = jnp.tile(mean, w).reshape(1, wc)
    invstd_row = jnp.tile(invstd, w).reshape(1, wc)

    x_flat = x.reshape(n, h, wc)                                      # lane-dense rows, f32
    seg_flat = seg.reshape(n, sh, swnc).astype(jnp.bfloat16)          # bf16 MXU operand

    out_flat = pl.pallas_call(
        spade_fused_kernel,
        out_shape=jax.ShapeDtypeStruct((n, h, wc), jnp.float32),
        grid_spec=pltpu.PrefetchScalarGridSpec(
            num_scalar_prefetch=0,
            grid=(n,),
            in_specs=[
                pl.BlockSpec((1, h, wc), lambda i: (i, 0, 0)),        # x
                pl.BlockSpec((1, sh, swnc), lambda i: (i, 0, 0)),     # segmap (bf16)
                pl.BlockSpec((1, wc), lambda i: (0, 0)),              # mean row
                pl.BlockSpec((1, wc), lambda i: (0, 0)),              # invstd row
                pl.BlockSpec((h, 3 * sh), lambda i: (0, 0)),          # L_cat
                pl.BlockSpec((swnc, 3 * wnh), lambda i: (0, 0)),      # Rs_cat
                pl.BlockSpec((1, wnh), lambda i: (0, 0)),             # shared-conv bias row
                pl.BlockSpec((3 * wnh, 2 * wc), lambda i: (0, 0)),    # gamma/beta weights
                pl.BlockSpec((1, 2 * wc), lambda i: (0, 0)),          # gamma/beta bias row
            ],
            out_specs=pl.BlockSpec((1, h, wc), lambda i: (i, 0, 0)),
        ),
        compiler_params=pltpu.CompilerParams(dimension_semantics=("parallel",)),
    )(x_flat, seg_flat, mean_row, invstd_row,
      consts["l_cat"], consts["rs_cat"], consts["bias_s"],
      consts["wgb"], consts["bias_gb"])

    return jnp.transpose(out_flat.reshape(n, h, w, c), (0, 3, 1, 2))


# ---------------------------------------------------------------------------
# Pure-JAX reference (gather-based bilinear + lax conv) for correctness checking.
# ---------------------------------------------------------------------------
def _bilinear_align_corners_ref(seg_nhwc, out_h, out_w):
    _, hin, win, _ = seg_nhwc.shape

    def coords(n_in, n_out):
        if n_out == 1 or n_in == 1:
            z = jnp.zeros((n_out,), jnp.int32)
            return z, z, jnp.zeros((n_out,), jnp.float32)
        scale = (n_in - 1) / (n_out - 1)
        pos = jnp.arange(n_out, dtype=jnp.float32) * scale
        i0 = jnp.clip(jnp.floor(pos).astype(jnp.int32), 0, n_in - 1)
        i1 = jnp.clip(i0 + 1, 0, n_in - 1)
        return i0, i1, pos - i0.astype(jnp.float32)

    y0, y1, fy = coords(hin, out_h)
    x0, x1, fx = coords(win, out_w)
    r0, r1 = seg_nhwc[:, y0, :, :], seg_nhwc[:, y1, :, :]
    v00, v01 = r0[:, :, x0, :], r0[:, :, x1, :]
    v10, v11 = r1[:, :, x0, :], r1[:, :, x1, :]
    fy = fy[None, :, None, None]
    fx = fx[None, None, :, None]
    top = v00 * (1.0 - fx) + v01 * fx
    bot = v10 * (1.0 - fx) + v11 * fx
    return top * (1.0 - fy) + bot * fy


def _conv_ref(x_nhwc, w_hwio, bias):
    y = lax.conv_general_dilated(
        x_nhwc, w_hwio, window_strides=(1, 1), padding="SAME",
        dimension_numbers=("NHWC", "HWIO", "NHWC"))
    return y + bias[None, None, None, :]


def spade_ref(x_nchw, seg_nchw, params):
    x = jnp.transpose(x_nchw, (0, 2, 3, 1)).astype(jnp.float32)
    seg = jnp.transpose(seg_nchw, (0, 2, 3, 1)).astype(jnp.float32)
    _, h, w, _ = x.shape
    mean = jnp.mean(x, axis=(0, 1, 2))
    var = jnp.mean((x - mean) ** 2, axis=(0, 1, 2))
    normalized = (x - mean) / jnp.sqrt(var + EPS)
    seg_up = _bilinear_align_corners_ref(seg, h, w)
    actv = jnp.maximum(_conv_ref(seg_up, params["w_shared"], params["b_shared"]), 0.0)
    gamma = _conv_ref(actv, params["w_gamma"], params["b_gamma"])
    beta = _conv_ref(actv, params["w_beta"], params["b_beta"])
    out = normalized * (1 + gamma) + beta
    return jnp.transpose(out, (0, 3, 1, 2))


if __name__ == "__main__":
    # Module config: norm_nc=8, n_classes=4, reduction=2 -> nhidden=4, ks=3.
    norm_nc, n_classes, nhidden = 8, 4, 4
    N, H, W = 2, 16, 16
    seg_h, seg_w = 8, 8   # lower-res segmap, bilinearly upsampled (align_corners=True)

    key = jax.random.PRNGKey(0)
    kx, kseg, k1, k2, k3, k4, k5, k6 = jax.random.split(key, 8)

    x = jax.random.normal(kx, (N, norm_nc, H, W), jnp.float32)               # NCHW
    segmap = jax.random.uniform(kseg, (N, n_classes, seg_h, seg_w), jnp.float32)

    # Deterministic synthetic parameters (HWIO weight layout for NHWC convs).
    params = {
        "w_shared": 0.1 * jax.random.normal(k1, (3, 3, n_classes, nhidden), jnp.float32),
        "b_shared": 0.05 * jax.random.normal(k2, (nhidden,), jnp.float32),
        "w_gamma": 0.1 * jax.random.normal(k3, (3, 3, nhidden, norm_nc), jnp.float32),
        "b_gamma": 0.05 * jax.random.normal(k4, (norm_nc,), jnp.float32),
        "w_beta": 0.1 * jax.random.normal(k5, (3, 3, nhidden, norm_nc), jnp.float32),
        "b_beta": 0.05 * jax.random.normal(k6, (norm_nc,), jnp.float32),
    }

    # Once-per-weight-update precompute (hoisted out of the forward pass).
    consts = jax.tree_util.tree_map(
        jax.block_until_ready, prepare_spade_constants(params, x.shape, segmap.shape))

    fwd = jax.jit(spade_forward)
    out = jax.block_until_ready(fwd(x, segmap, consts))
    ref = jax.block_until_ready(spade_ref(x, segmap, params))
    # bf16 MXU operands (f32 accumulation) vs f32 reference -> relaxed tolerance.
    np.testing.assert_allclose(np.asarray(out), np.asarray(ref), rtol=2e-2, atol=2e-2)

    print("KERNEL_OK")
</pallas_src>

<mosaic_0001>
module attributes {stable_mosaic.version = 11 : i64} {
  func.func @spade_fused_kernel(%arg0: i32, %arg1: memref<1x16x128xf32, #tpu.memory_space<vmem>>, %arg2: memref<1x8x32xbf16, #tpu.memory_space<vmem>>, %arg3: memref<1x128xf32, #tpu.memory_space<vmem>>, %arg4: memref<1x128xf32, #tpu.memory_space<vmem>>, %arg5: memref<16x24xbf16, #tpu.memory_space<vmem>>, %arg6: memref<32x384xbf16, #tpu.memory_space<vmem>>, %arg7: memref<1x128xf32, #tpu.memory_space<vmem>>, %arg8: memref<384x256xbf16, #tpu.memory_space<vmem>>, %arg9: memref<1x256xf32, #tpu.memory_space<vmem>>, %arg10: memref<1x16x128xf32, #tpu.memory_space<vmem>>) attributes {dimension_semantics = [#tpu.dimension_semantics<parallel>], iteration_bounds = array<i64: 2>, scalar_prefetch = 0 : i64, scratch_operands = 0 : i64, tpu.core_type = #tpu.core_type<tc>, window_params = [{transform_indices = @transform_0, window_bounds = array<i64: 1, 16, 128>}, {transform_indices = @transform_1, window_bounds = array<i64: 1, 8, 32>}, {pipeline_mode = #tpu.pipeline_mode<synchronous>, transform_indices = @transform_2, window_bounds = array<i64: 1, 128>}, {pipeline_mode = #tpu.pipeline_mode<synchronous>, transform_indices = @transform_3, window_bounds = array<i64: 1, 128>}, {pipeline_mode = #tpu.pipeline_mode<synchronous>, transform_indices = @transform_4, window_bounds = array<i64: 16, 24>}, {pipeline_mode = #tpu.pipeline_mode<synchronous>, transform_indices = @transform_5, window_bounds = array<i64: 32, 384>}, {pipeline_mode = #tpu.pipeline_mode<synchronous>, transform_indices = @transform_6, window_bounds = array<i64: 1, 128>}, {pipeline_mode = #tpu.pipeline_mode<synchronous>, transform_indices = @transform_7, window_bounds = array<i64: 384, 256>}, {pipeline_mode = #tpu.pipeline_mode<synchronous>, transform_indices = @transform_8, window_bounds = array<i64: 1, 256>}, {transform_indices = @transform_9, window_bounds = array<i64: 1, 16, 128>}]} {
    %c0 = arith.constant 0 : index
    %c0_0 = arith.constant 0 : index
    %c0_1 = arith.constant 0 : index
    %0 = vector.load %arg2[%c0, %c0_0, %c0_1] : memref<1x8x32xbf16, #tpu.memory_space<vmem>>, vector<1x8x32xbf16>
    %1 = vector.shape_cast %0 : vector<1x8x32xbf16> to vector<8x32xbf16>
    %c0_2 = arith.constant 0 : index
    %c0_3 = arith.constant 0 : index
    %2 = vector.load %arg6[%c0_2, %c0_3] : memref<32x384xbf16, #tpu.memory_space<vmem>>, vector<32x384xbf16>
    %cst = arith.constant dense<0.000000e+00> : vector<8x384xf32>
    %3 = tpu.matmul %1, %2, %cst {dimension_numbers = #tpu.dot_dimension_numbers<[1], [0], [0], [1], [0, 0, 1, 1], [], []>} : vector<8x32xbf16>, vector<32x384xbf16>, vector<8x384xf32> -> vector<8x384xf32>
    %4 = vector.extract_strided_slice %3 {offsets = [0, 0], sizes = [8, 128], strides = [1, 1]} : vector<8x384xf32> to vector<8x128xf32>
    %5 = vector.extract_strided_slice %3 {offsets = [0, 128], sizes = [8, 128], strides = [1, 1]} : vector<8x384xf32> to vector<8x128xf32>
    %6 = vector.extract_strided_slice %3 {offsets = [0, 256], sizes = [8, 128], strides = [1, 1]} : vector<8x384xf32> to vector<8x128xf32>
    %7 = tpu.concatenate %4, %5, %6 in 0 : vector<8x128xf32>, vector<8x128xf32>, vector<8x128xf32> -> vector<24x128xf32>
    %8 = arith.truncf %7 : vector<24x128xf32> to vector<24x128xbf16>
    %c0_4 = arith.constant 0 : index
    %c0_5 = arith.constant 0 : index
    %9 = vector.load %arg5[%c0_4, %c0_5] : memref<16x24xbf16, #tpu.memory_space<vmem>>, vector<16x24xbf16>
    %cst_6 = arith.constant dense<0.000000e+00> : vector<16x128xf32>
    %10 = tpu.matmul %9, %8, %cst_6 {dimension_numbers = #tpu.dot_dimension_numbers<[1], [0], [0], [1], [0, 0, 1, 1], [], []>} : vector<16x24xbf16>, vector<24x128xbf16>, vector<16x128xf32> -> vector<16x128xf32>
    %c0_7 = arith.constant 0 : index
    %c0_8 = arith.constant 0 : index
    %11 = vector.load %arg7[%c0_7, %c0_8] : memref<1x128xf32, #tpu.memory_space<vmem>>, vector<1x128xf32>
    %12 = vector.broadcast %11 : vector<1x128xf32> to vector<16x128xf32>
    %13 = arith.addf %10, %12 : vector<16x128xf32>
    %cst_9 = arith.constant 0.000000e+00 : f32
    %14 = vector.broadcast %cst_9 : f32 to vector<16x128xf32>
    %15 = arith.maximumf %13, %14 : vector<16x128xf32>
    %16 = tpu.iota {dimensions = array<i32: 0>} : vector<16x128xi32>
    %c0_i32 = arith.constant 0 : i32
    %17 = vector.broadcast %c0_i32 : i32 to vector<16x128xi32>
    %18 = arith.cmpi eq, %16, %17 : vector<16x128xi32>
    %c1_i32 = arith.constant 1 : i32
    %19 = tpu.dynamic_rotate %15 by %c1_i32 dim 0 : vector<16x128xf32>, i32 -> vector<16x128xf32>
    %cst_10 = arith.constant 0.000000e+00 : f32
    %20 = vector.broadcast %cst_10 : f32 to vector<16x128xf32>
    %21 = arith.select %18, %20, %19 : vector<16x128xi1>, vector<16x128xf32>
    %c15_i32 = arith.constant 15 : i32
    %22 = vector.broadcast %c15_i32 : i32 to vector<16x128xi32>
    %23 = arith.cmpi eq, %16, %22 : vector<16x128xi32>
    %c15_i32_11 = arith.constant 15 : i32
    %24 = tpu.dynamic_rotate %15 by %c15_i32_11 dim 0 : vector<16x128xf32>, i32 -> vector<16x128xf32>
    %cst_12 = arith.constant 0.000000e+00 : f32
    %25 = vector.broadcast %cst_12 : f32 to vector<16x128xf32>
    %26 = arith.select %23, %25, %24 : vector<16x128xi1>, vector<16x128xf32>
    %27 = tpu.concatenate %21, %15, %26 in 1 : vector<16x128xf32>, vector<16x128xf32>, vector<16x128xf32> -> vector<16x384xf32>
    %28 = arith.truncf %27 : vector<16x384xf32> to vector<16x384xbf16>
    %c0_13 = arith.constant 0 : index
    %c0_14 = arith.constant 0 : index
    %29 = vector.load %arg8[%c0_13, %c0_14] : memref<384x256xbf16, #tpu.memory_space<vmem>>, vector<384x256xbf16>
    %cst_15 = arith.constant dense<0.000000e+00> : vector<16x256xf32>
    %30 = tpu.matmul %28, %29, %cst_15 {dimension_numbers = #tpu.dot_dimension_numbers<[1], [0], [0], [1], [0, 0, 1, 1], [], []>} : vector<16x384xbf16>, vector<384x256xbf16>, vector<16x256xf32> -> vector<16x256xf32>
    %c0_16 = arith.constant 0 : index
    %c0_17 = arith.constant 0 : index
    %31 = vector.load %arg9[%c0_16, %c0_17] : memref<1x256xf32, #tpu.memory_space<vmem>>, vector<1x256xf32>
    %32 = vector.broadcast %31 : vector<1x256xf32> to vector<16x256xf32>
    %33 = arith.addf %30, %32 : vector<16x256xf32>
    %34 = vector.extract_strided_slice %33 {offsets = [0, 0], sizes = [16, 128], strides = [1, 1]} : vector<16x256xf32> to vector<16x128xf32>
    %35 = vector.extract_strided_slice %33 {offsets = [0, 128], sizes = [16, 128], strides = [1, 1]} : vector<16x256xf32> to vector<16x128xf32>
    %c0_18 = arith.constant 0 : index
    %c0_19 = arith.constant 0 : index
    %c0_20 = arith.constant 0 : index
    %36 = vector.load %arg1[%c0_18, %c0_19, %c0_20] : memref<1x16x128xf32, #tpu.memory_space<vmem>>, vector<1x16x128xf32>
    %37 = vector.shape_cast %36 : vector<1x16x128xf32> to vector<16x128xf32>
    %c0_21 = arith.constant 0 : index
    %c0_22 = arith.constant 0 : index
    %38 = vector.load %arg3[%c0_21, %c0_22] : memref<1x128xf32, #tpu.memory_space<vmem>>, vector<1x128xf32>
    %39 = vector.broadcast %38 : vector<1x128xf32> to vector<16x128xf32>
    %40 = arith.subf %37, %39 : vector<16x128xf32>
    %c0_23 = arith.constant 0 : index
    %c0_24 = arith.constant 0 : index
    %41 = vector.load %arg4[%c0_23, %c0_24] : memref<1x128xf32, #tpu.memory_space<vmem>>, vector<1x128xf32>
    %42 = vector.broadcast %41 : vector<1x128xf32> to vector<16x128xf32>
    %43 = arith.mulf %40, %42 : vector<16x128xf32>
    %cst_25 = arith.constant 1.000000e+00 : f32
    %44 = vector.broadcast %cst_25 : f32 to vector<16x128xf32>
    %45 = arith.addf %44, %34 : vector<16x128xf32>
    %46 = arith.mulf %43, %45 : vector<16x128xf32>
    %47 = arith.addf %46, %35 : vector<16x128xf32>
    %c0_26 = arith.constant 0 : index
    %c0_27 = arith.constant 0 : index
    %c0_28 = arith.constant 0 : index
    %48 = vector.load %arg10[%c0_26, %c0_27, %c0_28] : memref<1x16x128xf32, #tpu.memory_space<vmem>>, vector<1x16x128xf32>
    %49 = vector.shape_cast %48 : vector<1x16x128xf32> to vector<16x128xf32>
    %50 = vector.shape_cast %47 : vector<16x128xf32> to vector<1x16x128xf32>
    tpu.vector_store %arg10[%c0_26, %c0_27, %c0_28], %50 {strides = array<i32>} : memref<1x16x128xf32, #tpu.memory_space<vmem>>, vector<1x16x128xf32>,
    return
  }
  func.func @transform_0(%arg0: i32) -> (i32, i32, i32) {
    %c0_i32 = arith.constant 0 : i32
    %c0_i32_0 = arith.constant 0 : i32
    %c0_i32_1 = arith.constant 0 : i32
    return %arg0, %c0_i32, %c0_i32_0 : i32, i32, i32
  }
  func.func @transform_1(%arg0: i32) -> (i32, i32, i32) {
    %c0_i32 = arith.constant 0 : i32
    %c0_i32_0 = arith.constant 0 : i32
    %c0_i32_1 = arith.constant 0 : i32
    return %arg0, %c0_i32, %c0_i32_0 : i32, i32, i32
  }
  func.func @transform_2(%arg0: i32) -> (i32, i32) {
    %c0_i32 = arith.constant 0 : i32
    %c0_i32_0 = arith.constant 0 : i32
    %c0_i32_1 = arith.constant 0 : i32
    return %c0_i32, %c0_i32_0 : i32, i32
  }
  func.func @transform_3(%arg0: i32) -> (i32, i32) {
    %c0_i32 = arith.constant 0 : i32
    %c0_i32_0 = arith.constant 0 : i32
    %c0_i32_1 = arith.constant 0 : i32
    return %c0_i32, %c0_i32_0 : i32, i32
  }
  func.func @transform_4(%arg0: i32) -> (i32, i32) {
    %c0_i32 = arith.constant 0 : i32
    %c0_i32_0 = arith.constant 0 : i32
    %c0_i32_1 = arith.constant 0 : i32
    return %c0_i32, %c0_i32_0 : i32, i32
  }
  func.func @transform_5(%arg0: i32) -> (i32, i32) {
    %c0_i32 = arith.constant 0 : i32
    %c0_i32_0 = arith.constant 0 : i32
    %c0_i32_1 = arith.constant 0 : i32
    return %c0_i32, %c0_i32_0 : i32, i32
  }
  func.func @transform_6(%arg0: i32) -> (i32, i32) {
    %c0_i32 = arith.constant 0 : i32
    %c0_i32_0 = arith.constant 0 : i32
    %c0_i32_1 = arith.constant 0 : i32
    return %c0_i32, %c0_i32_0 : i32, i32
  }
  func.func @transform_7(%arg0: i32) -> (i32, i32) {
    %c0_i32 = arith.constant 0 : i32
    %c0_i32_0 = arith.constant 0 : i32
    %c0_i32_1 = arith.constant 0 : i32
    return %c0_i32, %c0_i32_0 : i32, i32
  }
  func.func @transform_8(%arg0: i32) -> (i32, i32) {
    %c0_i32 = arith.constant 0 : i32
    %c0_i32_0 = arith.constant 0 : i32
    %c0_i32_1 = arith.constant 0 : i32
    return %c0_i32, %c0_i32_0 : i32, i32
  }
  func.func @transform_9(%arg0: i32) -> (i32, i32, i32) {
    %c0_i32 = arith.constant 0 : i32
    %c0_i32_0 = arith.constant 0 : i32
    %c0_i32_1 = arith.constant 0 : i32
    return %arg0, %c0_i32, %c0_i32_0 : i32, i32, i32
  }
}

</mosaic_0001>

<llo_original>
// kernel: tile.18
$region0: #{tile.18}
  #allocation0 [shape = 's32[1]{0}', space=sflag, size = 0x4, scoped, tag = 'scoped memory for tile.18']
  %s0 = inlined_call_operand.vmem [shape: f32[8], index: 0, kind: input, shape index: {}]
  %s1 = inlined_call_operand.vmem [shape: f32[16,8], index: 1, kind: output, shape index: {}]
  // Predicated region
  $region2: #{tile.18} parent=0 // pred_check
    _
  $region3: #{tile.18} parent=0 // pred_check_branch
    %3 = sbr.rel (0) target = $region5
  $region4: #{tile.18} parent=0 // pred_region
    _
  $region5: #{tile.18} parent=0 // pred_fallthru
    _
  %v4 = vld [vmem:[%s0] ss:$0 sm:$0xff]
  %5 = vst [vmem:[%s1] sm:$0xff] %v4
  %s6 = scalar_lea.vmem %s1, 8
  %7 = vst [vmem:[%s6] sm:$0xff] %v4

// kernel: tile.19
$region0: #{tile.19}
  %s0 = inlined_call_operand.vmem [shape: f32[16,8], index: 0, kind: input, shape index: {}]
  %s1 = inlined_call_operand.vmem [shape: f32[1,128], index: 1, kind: output, shape index: {}]
  $region1: #{tile.19} parent=0
    #allocation0 [shape = 'u8[4096]{0}', space=vmem, size = 0x1000, scoped, tag = 'scoped mem for output reshape']
    %v2 = vld [vmem:[%s0] sm:$0x1]
    %vm3 = vcmask 64512
    %4 = vst.msk [vmem:[#allocation0] sm:$0x1] %vm3, %v2
    %s5 = scalar_lea.vmem %s0, 15
    %v6 = vld [vmem:[%s5] sm:$0x1]
    %7 = vrot.lane.b32.xlu0 %v6, 120
    %v8 = vpop.permute.xlu0 %7
    %vm9 = vcmask 1048512
    %10 = vst.msk [vmem:[#allocation0] sm:$0x1] %vm9, %v8
    %s11 = scalar_lea.vmem %s0, 14
    %v12 = vld [vmem:[%s11] sm:$0x1]
    %13 = vrot.lane.b32.xlu0 %v12, 112
    %v14 = vpop.permute.xlu0 %13
    %vm15 = vcmask 982912
    %16 = vst.msk [vmem:[#allocation0] sm:$0x1] %vm15, %v14
    %s17 = scalar_lea.vmem %s0, 13
    %v18 = vld [vmem:[%s17] sm:$0x1]
    %19 = vrot.lane.b32.xlu0 %v18, 104
    %v20 = vpop.permute.xlu0 %19
    %vm21 = vcmask 917312
    %22 = vst.msk [vmem:[#allocation0] sm:$0x1] %vm21, %v20
    %s23 = scalar_lea.vmem %s0, 12
    %v24 = vld [vmem:[%s23] sm:$0x1]
    %25 = vrot.lane.b32.xlu0 %v24, 96
    %v26 = vpop.permute.xlu0 %25
    %vm27 = vcmask 851712
    %28 = vst.msk [vmem:[#allocation0] sm:$0x1] %vm27, %v26
    %s29 = scalar_lea.vmem %s0, 11
    %v30 = vld [vmem:[%s29] sm:$0x1]
    %31 = vrot.lane.b32.xlu0 %v30, 88
    %v32 = vpop.permute.xlu0 %31
    %vm33 = vcmask 786112
    %34 = vst.msk [vmem:[#allocation0] sm:$0x1] %vm33, %v32
    %s35 = scalar_lea.vmem %s0, 10
    %v36 = vld [vmem:[%s35] sm:$0x1]
    %37 = vrot.lane.b32.xlu0 %v36, 80
    %v38 = vpop.permute.xlu0 %37
    %vm39 = vcmask 720512
    %40 = vst.msk [vmem:[#allocation0] sm:$0x1] %vm39, %v38
    %s41 = scalar_lea.vmem %s0, 9
    %v42 = vld [vmem:[%s41] sm:$0x1]
    %43 = vrot.lane.b32.xlu0 %v42, 72
    %v44 = vpop.permute.xlu0 %43
    %vm45 = vcmask 654912
    %46 = vst.msk [vmem:[#allocation0] sm:$0x1] %vm45, %v44
    %s47 = scalar_lea.vmem %s0, 8
    %v48 = vld [vmem:[%s47] sm:$0x1]
    %49 = vrot.lane.b32.xlu0 %v48, 64
    %v50 = vpop.permute.xlu0 %49
    %vm51 = vcmask 589312
    %52 = vst.msk [vmem:[#allocation0] sm:$0x1] %vm51, %v50
    %s53 = scalar_lea.vmem %s0, 7
    %v54 = vld [vmem:[%s53] sm:$0x1]
    %55 = vrot.lane.b32.xlu0 %v54, 56
    %v56 = vpop.permute.xlu0 %55
    %vm57 = vcmask 523712
    %58 = vst.msk [vmem:[#allocation0] sm:$0x1] %vm57, %v56
    %s59 = scalar_lea.vmem %s0, 6
    %v60 = vld [vmem:[%s59] sm:$0x1]
    %61 = vrot.lane.b32.xlu0 %v60, 48
    %v62 = vpop.permute.xlu0 %61
    %vm63 = vcmask 458112
    %64 = vst.msk [vmem:[#allocation0] sm:$0x1] %vm63, %v62
    %s65 = scalar_lea.vmem %s0, 5
    %v66 = vld [vmem:[%s65] sm:$0x1]
    %67 = vrot.lane.b32.xlu0 %v66, 40
    %v68 = vpop.permute.xlu0 %67
    %vm69 = vcmask 392512
    %70 = vst.msk [vmem:[#allocation0] sm:$0x1] %vm69, %v68
    %s71 = scalar_lea.vmem %s0, 4
    %v72 = vld [vmem:[%s71] sm:$0x1]
    %73 = vrot.lane.b32.xlu0 %v72, 32
    %v74 = vpop.permute.xlu0 %73
    %vm75 = vcmask 326912
    %76 = vst.msk [vmem:[#allocation0] sm:$0x1] %vm75, %v74
    %s77 = scalar_lea.vmem %s0, 3
    %v78 = vld [vmem:[%s77] sm:$0x1]
    %79 = vrot.lane.b32.xlu0 %v78, 24
    %v80 = vpop.permute.xlu0 %79
    %vm81 = vcmask 261312
    %82 = vst.msk [vmem:[#allocation0] sm:$0x1] %vm81, %v80
    %s83 = scalar_lea.vmem %s0, 2
    %v84 = vld [vmem:[%s83] sm:$0x1]
    %85 = vrot.lane.b32.xlu0 %v84, 16
    %v86 = vpop.permute.xlu0 %85
    %vm87 = vcmask 195712
    %88 = vst.msk [vmem:[#allocation0] sm:$0x1] %vm87, %v86
    %s89 = scalar_lea.vmem %s0, 1
    %v90 = vld [vmem:[%s89] sm:$0x1]
    %91 = vrot.lane.b32.xlu0 %v90, 8
    %v92 = vpop.permute.xlu0 %91
    %vm93 = vcmask 130112
    %94 = vst.msk [vmem:[#allocation0] sm:$0x1] %vm93, %v92
    %s96 = sshllo.u32 0, 1
    %v98 = vld [vmem:[#allocation0] sm:%s96]
    %s99 = sshllo.u32 0, 1
    %100 = vst [vmem:[%s1] sm:%s99] %v98

// kernel: spade_forward.1
$region0: #{spade_forward.1}
  #allocation0 [shape = 'u32[]', space=smem, size = 0x4, offset = 0x4, fixed_abs, tag = 'smem constant byte address 0x4 - core index']
  #allocation1 [shape = 'u32[144,128]{1,0:T(1,128)}', space=vmem, size = 0x12000, scoped, tag = 'internal scratch']
  %s0 = inlined_call_operand.vmem [shape: f32[2,16,128], index: 0, kind: input, shape index: {}]
  %s1 = inlined_call_operand.vmem [shape: bf16[2,8,32], index: 1, kind: input, shape index: {}]
  %s2 = inlined_call_operand.vmem [shape: f32[1,128], index: 2, kind: input, shape index: {}]
  %s3 = inlined_call_operand.vmem [shape: f32[1,128], index: 3, kind: input, shape index: {}]
  %s4 = inlined_call_operand.vmem [shape: bf16[16,24], index: 4, kind: input, shape index: {}]
  %s5 = inlined_call_operand.vmem [shape: bf16[32,384], index: 5, kind: input, shape index: {}]
  %s6 = inlined_call_operand.vmem [shape: f32[1,128], index: 6, kind: input, shape index: {}]
  %s7 = inlined_call_operand.vmem [shape: bf16[384,256], index: 7, kind: input, shape index: {}]
  %s8 = inlined_call_operand.vmem [shape: f32[1,256], index: 8, kind: input, shape index: {}]
  %s9 = inlined_call_operand.vmem [shape: f32[2,16,128], index: 9, kind: output, shape index: {}]
  %s10 = sld [smem:[#allocation0]]
  $region69: #{spade_forward.1} parent=0
    _
  %s12 = ssub.s32 1, %s10
  %s13 = scalar_select 0, %s12, %s10
  loop: start=0, step=1, limit=4
  $region2: #{spade_forward.1} parent=0 // loop_pre_header
    _
  $region3: #{spade_forward.1} parent=0 // loop_header
    %s15 = sphi 0, %s19
    %p16 = scmp.ge.s32.totalorder %s15, 4
    %s25 = sphi 0, %s27
    %s28 = sphi 0, %s25
    %s29 = sphi 0, %s28
    %s45 = sphi 0, %s29
    %s51 = sphi 0, %s53
    %s54 = sphi 0, %s51
    %s55 = sphi 0, %s54
    %s71 = sphi 0, %s55
    %s75 = sphi 0, %s75
    %s77 = sphi 0, %s75
    %s78 = sphi 0, %s77
    %s92 = sphi 0, %s78
    %s96 = sphi 0, %s96
    %s98 = sphi 0, %s96
    %s99 = sphi 0, %s98
    %s113 = sphi 0, %s99
    %s117 = sphi 0, %s117
    %s119 = sphi 0, %s117
    %s120 = sphi 0, %s119
    %s134 = sphi 0, %s120
    %s138 = sphi 0, %s138
    %s140 = sphi 0, %s138
    %s141 = sphi 0, %s140
    %s155 = sphi 0, %s141
    %s159 = sphi 0, %s159
    %s161 = sphi 0, %s159
    %s162 = sphi 0, %s161
    %s176 = sphi 0, %s162
    %s180 = sphi 0, %s180
    %s182 = sphi 0, %s180
    %s183 = sphi 0, %s182
    %s197 = sphi 0, %s183
    %s201 = sphi 0, %s201
    %s203 = sphi 0, %s201
    %s204 = sphi 0, %s203
    %s218 = sphi 0, %s204
    %s224 = sphi 0, %s226
    %s227 = sphi 0, %s224
    %s228 = sphi 0, %s227
    %s244 = sphi 0, %s228
  $region4: #{spade_forward.1} parent=0 // loop_header_branch
    %18 = sbr.rel (%p16) target = $region8
  $region5: #{spade_forward.1} parent=0 // loop_body
    %s20 = ssub.s32 %s15, 1
    %s21 = ssub.s32 %s15, 2
    %s22 = sadd.s32 %s15, 1
    %s23 = ssub.s32 %s15, %s22
    %p24 = scmp.eq.s32.totalorder %s23, 0
    %s26 = sadd.s32 %s25, 1
    %s27 = scalar_select %p24, %s25, %s26
    %p30 = pneg %p24
    %p31 = scmp.eq.s32.totalorder %s15, 1
    %p32 = por %p30, %p31
    %p33 = scmp.ne.s32.totalorder %s25, %s28
    %p34 = scmp.eq.s32.totalorder %s15, 0
    %p35 = por %p33, %p34
    %p36 = scmp.ne.s32.totalorder %s25, %s28
    %p37 = scmp.eq.s32.totalorder %s20, 1
    %p38 = por %p36, %p37
    %p39 = scmp.ne.s32.totalorder %s28, %s29
    %p40 = scmp.eq.s32.totalorder %s20, 0
    %p41 = por %p39, %p40
    %p42 = scmp.ne.s32.totalorder %s28, %s29
    %p43 = scmp.eq.s32.totalorder %s21, 1
    %p44 = por %p42, %p43
    %p46 = scmp.ne.s32.totalorder %s29, %s45
    %p47 = scmp.eq.s32.totalorder %s21, 0
    %p48 = por %p46, %p47
    %s49 = ssub.s32 %s15, %s22
    %p50 = scmp.eq.s32.totalorder %s49, 0
    %s52 = sadd.s32 %s51, 1
    %s53 = scalar_select %p50, %s51, %s52
    %p56 = pneg %p50
    %p57 = scmp.eq.s32.totalorder %s15, 1
    %p58 = por %p56, %p57
    %p59 = scmp.ne.s32.totalorder %s51, %s54
    %p60 = scmp.eq.s32.totalorder %s15, 0
    %p61 = por %p59, %p60
    %p62 = scmp.ne.s32.totalorder %s51, %s54
    %p63 = scmp.eq.s32.totalorder %s20, 1
    %p64 = por %p62, %p63
    %p65 = scmp.ne.s32.totalorder %s54, %s55
    %p66 = scmp.eq.s32.totalorder %s20, 0
    %p67 = por %p65, %p66
    %p68 = scmp.ne.s32.totalorder %s54, %s55
    %p69 = scmp.eq.s32.totalorder %s21, 1
    %p70 = por %p68, %p69
    %p72 = scmp.ne.s32.totalorder %s55, %s71
    %p73 = scmp.eq.s32.totalorder %s21, 0
    %p74 = por %p72, %p73
    %s76 = sadd.s32 %s75, 1
    %p79 = scmp.eq.s32.totalorder %s15, 1
    %p80 = scmp.ne.s32.totalorder %s75, %s77
    %p81 = scmp.eq.s32.totalorder %s15, 0
    %p82 = por %p80, %p81
    %p83 = scmp.ne.s32.totalorder %s75, %s77
    %p84 = scmp.eq.s32.totalorder %s20, 1
    %p85 = por %p83, %p84
    %p86 = scmp.ne.s32.totalorder %s77, %s78
    %p87 = scmp.eq.s32.totalorder %s20, 0
    %p88 = por %p86, %p87
    %p89 = scmp.ne.s32.totalorder %s77, %s78
    %p90 = scmp.eq.s32.totalorder %s21, 1
    %p91 = por %p89, %p90
    %p93 = scmp.ne.s32.totalorder %s78, %s92
    %p94 = scmp.eq.s32.totalorder %s21, 0
    %p95 = por %p93, %p94
    %s97 = sadd.s32 %s96, 1
    %p100 = scmp.eq.s32.totalorder %s15, 1
    %p101 = scmp.ne.s32.totalorder %s96, %s98
    %p102 = scmp.eq.s32.totalorder %s15, 0
    %p103 = por %p101, %p102
    %p104 = scmp.ne.s32.totalorder %s96, %s98
    %p105 = scmp.eq.s32.totalorder %s20, 1
    %p106 = por %p104, %p105
    %p107 = scmp.ne.s32.totalorder %s98, %s99
    %p108 = scmp.eq.s32.totalorder %s20, 0
    %p109 = por %p107, %p108
    %p110 = scmp.ne.s32.totalorder %s98, %s99
    %p111 = scmp.eq.s32.totalorder %s21, 1
    %p112 = por %p110, %p111
    %p114 = scmp.ne.s32.totalorder %s99, %s113
    %p115 = scmp.eq.s32.totalorder %s21, 0
    %p116 = por %p114, %p115
    %s118 = sadd.s32 %s117, 1
    %p121 = scmp.eq.s32.totalorder %s15, 1
    %p122 = scmp.ne.s32.totalorder %s117, %s119
    %p123 = scmp.eq.s32.totalorder %s15, 0
    %p124 = por %p122, %p123
    %p125 = scmp.ne.s32.totalorder %s117, %s119
    %p126 = scmp.eq.s32.totalorder %s20, 1
    %p127 = por %p125, %p126
    %p128 = scmp.ne.s32.totalorder %s119, %s120
    %p129 = scmp.eq.s32.totalorder %s20, 0
    %p130 = por %p128, %p129
    %p131 = scmp.ne.s32.totalorder %s119, %s120
    %p132 = scmp.eq.s32.totalorder %s21, 1
    %p133 = por %p131, %p132
    %p135 = scmp.ne.s32.totalorder %s120, %s134
    %p136 = scmp.eq.s32.totalorder %s21, 0
    %p137 = por %p135, %p136
    %s139 = sadd.s32 %s138, 1
    %p142 = scmp.eq.s32.totalorder %s15, 1
    %p143 = scmp.ne.s32.totalorder %s138, %s140
    %p144 = scmp.eq.s32.totalorder %s15, 0
    %p145 = por %p143, %p144
    %p146 = scmp.ne.s32.totalorder %s138, %s140
    %p147 = scmp.eq.s32.totalorder %s20, 1
    %p148 = por %p146, %p147
    %p149 = scmp.ne.s32.totalorder %s140, %s141
    %p150 = scmp.eq.s32.totalorder %s20, 0
    %p151 = por %p149, %p150
    %p152 = scmp.ne.s32.totalorder %s140, %s141
    %p153 = scmp.eq.s32.totalorder %s21, 1
    %p154 = por %p152, %p153
    %p156 = scmp.ne.s32.totalorder %s141, %s155
    %p157 = scmp.eq.s32.totalorder %s21, 0
    %p158 = por %p156, %p157
    %s160 = sadd.s32 %s159, 1
    %p163 = scmp.eq.s32.totalorder %s15, 1
    %p164 = scmp.ne.s32.totalorder %s159, %s161
    %p165 = scmp.eq.s32.totalorder %s15, 0
    %p166 = por %p164, %p165
    %p167 = scmp.ne.s32.totalorder %s159, %s161
    %p168 = scmp.eq.s32.totalorder %s20, 1
    %p169 = por %p167, %p168
    %p170 = scmp.ne.s32.totalorder %s161, %s162
    %p171 = scmp.eq.s32.totalorder %s20, 0
    %p172 = por %p170, %p171
    %p173 = scmp.ne.s32.totalorder %s161, %s162
    %p174 = scmp.eq.s32.totalorder %s21, 1
    %p175 = por %p173, %p174
    %p177 = scmp.ne.s32.totalorder %s162, %s176
    %p178 = scmp.eq.s32.totalorder %s21, 0
    %p179 = por %p177, %p178
    %s181 = sadd.s32 %s180, 1
    %p184 = scmp.eq.s32.totalorder %s15, 1
    %p185 = scmp.ne.s32.totalorder %s180, %s182
    %p186 = scmp.eq.s32.totalorder %s15, 0
    %p187 = por %p185, %p186
    %p188 = scmp.ne.s32.totalorder %s180, %s182
    %p189 = scmp.eq.s32.totalorder %s20, 1
    %p190 = por %p188, %p189
    %p191 = scmp.ne.s32.totalorder %s182, %s183
    %p192 = scmp.eq.s32.totalorder %s20, 0
    %p193 = por %p191, %p192
    %p194 = scmp.ne.s32.totalorder %s182, %s183
    %p195 = scmp.eq.s32.totalorder %s21, 1
    %p196 = por %p194, %p195
    %p198 = scmp.ne.s32.totalorder %s183, %s197
    %p199 = scmp.eq.s32.totalorder %s21, 0
    %p200 = por %p198, %p199
    %s202 = sadd.s32 %s201, 1
    %p205 = scmp.eq.s32.totalorder %s15, 1
    %p206 = scmp.ne.s32.totalorder %s201, %s203
    %p207 = scmp.eq.s32.totalorder %s15, 0
    %p208 = por %p206, %p207
    %p209 = scmp.ne.s32.totalorder %s201, %s203
    %p210 = scmp.eq.s32.totalorder %s20, 1
    %p211 = por %p209, %p210
    %p212 = scmp.ne.s32.totalorder %s203, %s204
    %p213 = scmp.eq.s32.totalorder %s20, 0
    %p214 = por %p212, %p213
    %p215 = scmp.ne.s32.totalorder %s203, %s204
    %p216 = scmp.eq.s32.totalorder %s21, 1
    %p217 = por %p215, %p216
    %p219 = scmp.ne.s32.totalorder %s204, %s218
    %p220 = scmp.eq.s32.totalorder %s21, 0
    %p221 = por %p219, %p220
    %s222 = ssub.s32 %s15, %s22
    %p223 = scmp.eq.s32.totalorder %s222, 0
    %s225 = sadd.s32 %s224, 1
    %s226 = scalar_select %p223, %s224, %s225
    %p229 = pneg %p223
    %p230 = scmp.eq.s32.totalorder %s15, 1
    %p231 = por %p229, %p230
    %p232 = scmp.ne.s32.totalorder %s224, %s227
    %p233 = scmp.eq.s32.totalorder %s15, 0
    %p234 = por %p232, %p233
    %p235 = scmp.ne.s32.totalorder %s224, %s227
    %p236 = scmp.eq.s32.totalorder %s20, 1
    %p237 = por %p235, %p236
    %p238 = scmp.ne.s32.totalorder %s227, %s228
    %p239 = scmp.eq.s32.totalorder %s20, 0
    %p240 = por %p238, %p239
    %p241 = scmp.ne.s32.totalorder %s227, %s228
    %p242 = scmp.eq.s32.totalorder %s21, 1
    %p243 = por %p241, %p242
    %p245 = scmp.ne.s32.totalorder %s228, %s244
    %p246 = scmp.eq.s32.totalorder %s21, 0
    %p247 = por %p245, %p246
    %p248 = scmp.le.s32.totalorder 1, %s15
    %p249 = scmp.lt.s32.totalorder %s15, 3
    %p250 = pnand %p248, %p249
    %p251 = pneg %p250
    // Predicated region
    $region9: #{spade_forward.1} parent=5 // pred_check
      _
    $region10: #{spade_forward.1} parent=5 // pred_check_branch
      %253 = sbr.rel (%p250) target = $region12
    $region11: #{spade_forward.1} parent=5 // pred_region
      %s254 = ssub.s32 %s15, 1
      // Predicated region
      $region13: #{spade_forward.1} parent=11 // pred_check
        %p255 = pneg %p88
      $region14: #{spade_forward.1} parent=11 // pred_check_branch
        %257 = sbr.rel (%p255) target = $region16
      $region15: #{spade_forward.1} parent=11 // pred_region
        _
      $region16: #{spade_forward.1} parent=11 // pred_fallthru
        _
      // Predicated region
      $region17: #{spade_forward.1} parent=11 // pred_check
        %p258 = pneg %p109
      $region18: #{spade_forward.1} parent=11 // pred_check_branch
        %260 = sbr.rel (%p258) target = $region20
      $region19: #{spade_forward.1} parent=11 // pred_region
        _
      $region20: #{spade_forward.1} parent=11 // pred_fallthru
        _
      // Predicated region
      $region21: #{spade_forward.1} parent=11 // pred_check
        %p261 = pneg %p130
      $region22: #{spade_forward.1} parent=11 // pred_check_branch
        %263 = sbr.rel (%p261) target = $region24
      $region23: #{spade_forward.1} parent=11 // pred_region
        _
      $region24: #{spade_forward.1} parent=11 // pred_fallthru
        _
      // Predicated region
      $region25: #{spade_forward.1} parent=11 // pred_check
        %p264 = pneg %p151
      $region26: #{spade_forward.1} parent=11 // pred_check_branch
        %266 = sbr.rel (%p264) target = $region28
      $region27: #{spade_forward.1} parent=11 // pred_region
        _
      $region28: #{spade_forward.1} parent=11 // pred_fallthru
        _
      // Predicated region
      $region29: #{spade_forward.1} parent=11 // pred_check
        %p267 = pneg %p172
      $region30: #{spade_forward.1} parent=11 // pred_check_branch
        %269 = sbr.rel (%p267) target = $region32
      $region31: #{spade_forward.1} parent=11 // pred_region
        _
      $region32: #{spade_forward.1} parent=11 // pred_fallthru
        _
      // Predicated region
      $region33: #{spade_forward.1} parent=11 // pred_check
        %p270 = pneg %p193
      $region34: #{spade_forward.1} parent=11 // pred_check_branch
        %272 = sbr.rel (%p270) target = $region36
      $region35: #{spade_forward.1} parent=11 // pred_region
        _
      $region36: #{spade_forward.1} parent=11 // pred_fallthru
        _
      // Predicated region
      $region37: #{spade_forward.1} parent=11 // pred_check
        %p273 = pneg %p214
      $region38: #{spade_forward.1} parent=11 // pred_check_branch
        %275 = sbr.rel (%p273) target = $region40
      $region39: #{spade_forward.1} parent=11 // pred_region
        _
      $region40: #{spade_forward.1} parent=11 // pred_fallthru
        _
    $region12: #{spade_forward.1} parent=5 // pred_fallthru
      _
    %p276 = scmp.lt.s32.totalorder %s15, 2
    // Predicated region
    $region41: #{spade_forward.1} parent=5 // pred_check
      %p277 = pneg %p276
    $region42: #{spade_forward.1} parent=5 // pred_check_branch
      %279 = sbr.rel (%p277) target = $region44
    $region43: #{spade_forward.1} parent=5 // pred_region
      // Predicated region
      $region45: #{spade_forward.1} parent=43 // pred_check
        %p280 = pneg %p35
      $region46: #{spade_forward.1} parent=43 // pred_check_branch
        %282 = sbr.rel (%p280) target = $region48
      $region47: #{spade_forward.1} parent=43 // pred_region
        %p283 = scmp.lt.s32.totalorder %s15, 1
        %s284 = scalar_select %p283, %s15, 1
        %s285 = smul.addr %s284, 2
        %s286 = smul.addr %s285, 8
        %s287 = scalar_lea.vmem %s0, %s286
      $region48: #{spade_forward.1} parent=43 // pred_fallthru
        _
      // Predicated region
      $region49: #{spade_forward.1} parent=43 // pred_check
        %p288 = pneg %p61
      $region50: #{spade_forward.1} parent=43 // pred_check_branch
        %290 = sbr.rel (%p288) target = $region52
      $region51: #{spade_forward.1} parent=43 // pred_region
        %p291 = scmp.lt.s32.totalorder %s15, 1
        %s292 = scalar_select %p291, %s15, 1
        %s293 = smul.addr %s292, 4
        %s294 = scalar_lea.vmem %s1, %s293
      $region52: #{spade_forward.1} parent=43 // pred_fallthru
        _
    $region44: #{spade_forward.1} parent=5 // pred_fallthru
      _
    %p295 = scmp.le.s32.totalorder 1, %s15
    %p296 = scmp.lt.s32.totalorder %s15, 3
    %p297 = pnand %p295, %p296
    %p298 = pneg %p297
    // Predicated region
    $region53: #{spade_forward.1} parent=5 // pred_check
      _
    $region54: #{spade_forward.1} parent=5 // pred_check_branch
      %300 = sbr.rel (%p297) target = $region56
    $region55: #{spade_forward.1} parent=5 // pred_region
      %s301 = ssub.s32 %s15, 1
      %p302 = scmp.lt.s32.totalorder %s20, 1
      %s303 = scalar_select %p302, %s20, 1
      %s304 = smul.addr %s303, 2
      %s305 = smul.addr %s304, 8
      %s306 = scalar_lea.vmem %s0, %s305
      %p307 = pneg %p41
      %p308 = pneg %p38
      %p309 = scmp.lt.s32.totalorder %s20, 1
      %s310 = scalar_select %p309, %s20, 1
      %s311 = smul.addr %s310, 4
      %s312 = scalar_lea.vmem %s1, %s311
      %p313 = pneg %p67
      %p314 = pneg %p64
      %p315 = pneg %p88
      %p316 = pneg %p85
      %p317 = pneg %p109
      %p318 = pneg %p106
      %p319 = pneg %p130
      %p320 = pneg %p127
      %p321 = pneg %p151
      %p322 = pneg %p148
      %p323 = pneg %p172
      %p324 = pneg %p169
      %p325 = pneg %p193
      %p326 = pneg %p190
      %p327 = pneg %p214
      %p328 = pneg %p211
      %p329 = pneg %p240
      %p330 = pneg %p237
      %p331 = scmp.lt.s32.totalorder %s20, 1
      %s332 = scalar_select %p331, %s20, 1
      %s333 = smul.addr %s332, 2
      %s334 = smul.addr %s333, 8
      %s335 = scalar_lea.vmem %s9, %s334
      %p336 = scmp.lt.s32.totalorder %s20, 1
      %s337 = scalar_select %p336, %s20, 1
      %s338 = smul.addr %s337, 2
      %s339 = smul.addr %s338, 8
      %s340 = scalar_lea.vmem %s0, %s339
      %p341 = scmp.lt.s32.totalorder %s20, 1
      %s342 = scalar_select %p341, %s20, 1
      %s343 = smul.addr %s342, 4
      %s344 = scalar_lea.vmem %s1, %s343
      %p345 = scmp.lt.s32.totalorder %s20, 1
      %s346 = scalar_select %p345, %s20, 1
      %s347 = smul.addr %s346, 2
      %s348 = smul.addr %s347, 8
      %s349 = scalar_lea.vmem %s9, %s348
      %v351 = vld [vmem:[%s344] sm:$0xf]
      %v352 = vld [vmem:[%s5] sm:$0xff]
      %v353 = vld [vmem:[%s5 + $0x8] sm:$0xf]
      %v354 = vld [vmem:[%s5 + $0xc] sm:$0xff]
      %v355 = vld [vmem:[%s5 + $0x14] sm:$0xf]
      %v356 = vld [vmem:[%s5 + $0x18] sm:$0xff]
      %v357 = vld [vmem:[%s5 + $0x20] sm:$0xf]
      %v358 = vld [vmem:[%s5 + $0x24] sm:$0xff]
      %v359 = vld [vmem:[%s5 + $0x2c] sm:$0xf]
      %v368 = vunpack.c.l.b16 %v352
      %v369 = vunpack.c.h.b16 %v352
      %v370 = vunpack.c.l.b16 %v353
      %v371 = vunpack.c.l.b16 %v354
      %v372 = vunpack.c.h.b16 %v354
      %v373 = vunpack.c.l.b16 %v355
      %v374 = vunpack.c.l.b16 %v356
      %v375 = vunpack.c.h.b16 %v356
      %v376 = vunpack.c.l.b16 %v357
      %v377 = vunpack.c.l.b16 %v358
      %v378 = vunpack.c.h.b16 %v358
      %v379 = vunpack.c.l.b16 %v359
      %v380 = vpack.c.b16 %v371, %v368
      %v381 = vpack.c.b16 %v372, %v369
      %v382 = vpack.c.b16 %v373, %v370
      %v383 = vpack.c.b16 %v377, %v374
      %v384 = vpack.c.b16 %v378, %v375
      %v385 = vpack.c.b16 %v379, %v376
      %vm392 = vcmask 261120
      %v394 = vsel %vm392, %v351, 0
      %396 = vmatprep.subr.bf16.mxu0 %v381
      %397 = vmatpush1.bf16.msra.mxu0 %v380
      %398 = vmatprep.subr.bf16.mxu0 %v384
      %399 = vmatpush1.bf16.msra.mxu0 %v383
      %400 = vmatprep.subr.bf16.mxu0 0
      %401 = vmatpush1.bf16.msra.mxu0 0
      %402 = vmatprep.subr.bf16.mxu0 0
      %403 = vmatpush1.bf16.msra.mxu0 0
      %404 = vmatprep.subr.bf16.mxu0 0
      %405 = vmatpush1.bf16.msra.mxu0 0
      %406 = vmatprep.subr.bf16.mxu0 0
      %407 = vmatpush1.bf16.msra.mxu0 0
      %408 = vmatprep.subr.bf16.mxu0 0
      %409 = vmatpush1.bf16.msra.mxu0 0
      %410 = vmatprep.subr.bf16.mxu0 0
      %411 = vmatpush1.bf16.msra.mxu0 0
      %412 = vmatprep.subr.bf16.mxu0 0
      %413 = vmatpush1.bf16.msra.mxu0 0
      %414 = vmatprep.subr.bf16.mxu0 0
      %415 = vmatpush1.bf16.msra.mxu0 0
      %416 = vmatprep.subr.bf16.mxu0 0
      %417 = vmatpush1.bf16.msra.mxu0 0
      %418 = vmatprep.subr.bf16.mxu0 0
      %419 = vmatpush1.bf16.msra.mxu0 0
      %420 = vmatprep.subr.bf16.mxu0 0
      %421 = vmatpush1.bf16.msra.mxu0 0
      %422 = vmatprep.subr.bf16.mxu0 0
      %423 = vmatpush1.bf16.msra.mxu0 0
      %424 = vmatprep.subr.bf16.mxu0 0
      %425 = vmatpush1.bf16.msra.mxu0 0
      %426 = vmatprep.subr.bf16.mxu0 0
      %427 = vmatpush1.bf16.msra.mxu0 0
      %428 = vmatprep.mubr.bf16.mxu0 0
      %429 = vmatmul.mubr.bf16.gmra.mrb[0].mxu0 %v394
      %v430 = vpop.f32.mrb[0].mxu0
      %v431 = vadd.f32 0.0, %v430
      %v432 = vpop.f32.mrb[0].mxu0
      %v433 = vadd.f32 0.0, %v432
      %v434 = vpop.f32.mrb[0].mxu0
      %v435 = vpop.f32.mrb[0].mxu0
      %436 = vdwg.mxu0
      %437 = vmatprep.subr.bf16.mxu0 0
      %438 = vmatpush1.bf16.msra.mxu0 %v382
      %439 = vmatprep.subr.bf16.mxu0 0
      %440 = vmatpush1.bf16.msra.mxu0 %v385
      %441 = vmatprep.subr.bf16.mxu0 0
      %442 = vmatpush1.bf16.msra.mxu0 0
      %443 = vmatprep.subr.bf16.mxu0 0
      %444 = vmatpush1.bf16.msra.mxu0 0
      %445 = vmatprep.subr.bf16.mxu0 0
      %446 = vmatpush1.bf16.msra.mxu0 0
      %447 = vmatprep.subr.bf16.mxu0 0
      %448 = vmatpush1.bf16.msra.mxu0 0
      %449 = vmatprep.subr.bf16.mxu0 0
      %450 = vmatpush1.bf16.msra.mxu0 0
      %451 = vmatprep.subr.bf16.mxu0 0
      %452 = vmatpush1.bf16.msra.mxu0 0
      %453 = vmatprep.subr.bf16.mxu0 0
      %454 = vmatpush1.bf16.msra.mxu0 0
      %455 = vmatprep.subr.bf16.mxu0 0
      %456 = vmatpush1.bf16.msra.mxu0 0
      %457 = vmatprep.subr.bf16.mxu0 0
      %458 = vmatpush1.bf16.msra.mxu0 0
      %459 = vmatprep.subr.bf16.mxu0 0
      %460 = vmatpush1.bf16.msra.mxu0 0
      %461 = vmatprep.subr.bf16.mxu0 0
      %462 = vmatpush1.bf16.msra.mxu0 0
      %463 = vmatprep.subr.bf16.mxu0 0
      %464 = vmatpush1.bf16.msra.mxu0 0
      %465 = vmatprep.subr.bf16.mxu0 0
      %466 = vmatpush1.bf16.msra.mxu0 0
      %467 = vmatprep.subr.bf16.mxu0 0
      %468 = vmatpush1.bf16.msra.mxu0 0
      %469 = vmatprep.mubr.bf16.mxu0 0
      %470 = vmatmul.mubr.bf16.gmra.mrb[0].mxu0 %v394
      %v471 = vpop.f32.mrb[0].mxu0
      %v472 = vadd.f32 0.0, %v471
      %v473 = vpop.f32.mrb[0].mxu0
      %v474 = vpop.f32.mrb[0].mxu0
      %v475 = vpop.f32.mrb[0].mxu0
      %476 = vdwg.mxu0
      %v477 = vpack.c.bf16 %v433, %v431
      %v478 = vpack.c.bf16 %v472, %v472
      %v479 = vld [vmem:[%s4] sm:$0xf]
      %v480 = vld [vmem:[%s4 + $0x4] sm:$0xf]
      %v481 = vld [vmem:[%s6] sm:$0x1]
      %v483 = vlaneseq
      %v484 = vshrl.u32 %v483, 7
      %v485 = vsub.s32 0, %v484
      %v486 = vrot.slane %v481, %v485
      %v490 = vunpack.c.l.b16 %v479
      %v491 = vunpack.c.l.b16 %v480
      %v492 = vpack.c.b16 %v491, %v490
      %vm493 = vcmask 195584
      %v495 = vsel %vm493, %v492, 0
      %vm497 = vcmask 1043456
      %v499 = vsel %vm497, %v478, 0
      %501 = vmatprep.subr.bf16.mxu0 0
      %502 = vmatpush1.bf16.msra.mxu0 %v477
      %503 = vmatprep.subr.bf16.mxu0 0
      %504 = vmatpush1.bf16.msra.mxu0 %v499
      %505 = vmatprep.subr.bf16.mxu0 0
      %506 = vmatpush1.bf16.msra.mxu0 0
      %507 = vmatprep.subr.bf16.mxu0 0
      %508 = vmatpush1.bf16.msra.mxu0 0
      %509 = vmatprep.subr.bf16.mxu0 0
      %510 = vmatpush1.bf16.msra.mxu0 0
      %511 = vmatprep.subr.bf16.mxu0 0
      %512 = vmatpush1.bf16.msra.mxu0 0
      %513 = vmatprep.subr.bf16.mxu0 0
      %514 = vmatpush1.bf16.msra.mxu0 0
      %515 = vmatprep.subr.bf16.mxu0 0
      %516 = vmatpush1.bf16.msra.mxu0 0
      %517 = vmatprep.subr.bf16.mxu0 0
      %518 = vmatpush1.bf16.msra.mxu0 0
      %519 = vmatprep.subr.bf16.mxu0 0
      %520 = vmatpush1.bf16.msra.mxu0 0
      %521 = vmatprep.subr.bf16.mxu0 0
      %522 = vmatpush1.bf16.msra.mxu0 0
      %523 = vmatprep.subr.bf16.mxu0 0
      %524 = vmatpush1.bf16.msra.mxu0 0
      %525 = vmatprep.subr.bf16.mxu0 0
      %526 = vmatpush1.bf16.msra.mxu0 0
      %527 = vmatprep.subr.bf16.mxu0 0
      %528 = vmatpush1.bf16.msra.mxu0 0
      %529 = vmatprep.subr.bf16.mxu0 0
      %530 = vmatpush1.bf16.msra.mxu0 0
      %531 = vmatprep.subr.bf16.mxu0 0
      %532 = vmatpush1.bf16.msra.mxu0 0
      %533 = vmatprep.mubr.bf16.mxu0 0
      %534 = vmatmul.mubr.bf16.gmra.mrb[0].mxu0 %v495
      %v535 = vpop.f32.mrb[0].mxu0
      %v536 = vadd.f32 %v486, %v535
      %v537 = vpop.f32.mrb[0].mxu0
      %v538 = vpop.f32.mrb[0].mxu0
      %v539 = vadd.f32 %v486, %v538
      %v540 = vpop.f32.mrb[0].mxu0
      %541 = vdwg.mxu0
      %v542 = vmax.f32 %v536, 0.0
      %v543 = vmax.f32 %v539, 0.0
      %v544 = vlaneseq
      %v545 = vshrl.u32 %v544, 7
      %v546 = vadd.s32 %v545, 8
      %vm547 = vcmp.eq.s32.totalorder %v545, 0
      %vm548 = vcmp.eq.s32.totalorder %v546, 0
      %v549 = vrot.slane %v542, 7
      %v550 = vrot.slane %v543, 7
      %vm551 = vcmp.lt.s32.totalorder %v545, 1
      %v552 = vsel %vm551, %v549, %v550
      %v553 = vsel %vm551, %v550, %v549
      %v554 = vsel %vm547, 0.0, %v553
      %v555 = vsel %vm548, 0.0, %v552
      %vm556 = vcmp.eq.s32.totalorder %v545, 15
      %vm557 = vcmp.eq.s32.totalorder %v546, 15
      %v558 = vrot.slane %v542, 1
      %v559 = vrot.slane %v543, 1
      %vm560 = vcmp.lt.s32.totalorder %v545, 7
      %v561 = vsel %vm560, %v558, %v559
      %v562 = vsel %vm560, %v559, %v558
      %v563 = vsel %vm556, 0.0, %v561
      %v564 = vsel %vm557, 0.0, %v562
      %v565 = vpack.c.bf16 %v555, %v554
      %v566 = vpack.c.bf16 %v543, %v542
      %v567 = vpack.c.bf16 %v564, %v563
      %v568 = vld [vmem:[%s7] sm:$0xff]
      %v569 = vld [vmem:[%s7 + $0x8] sm:$0xff]
      %v570 = vld [vmem:[%s7 + $0x10] sm:$0xff]
      %v571 = vld [vmem:[%s7 + $0x18] sm:$0xff]
      %v572 = vld [vmem:[%s7 + $0x20] sm:$0xff]
      %v573 = vld [vmem:[%s7 + $0x28] sm:$0xff]
      %v574 = vld [vmem:[%s7 + $0x30] sm:$0xff]
      %v575 = vld [vmem:[%s7 + $0x38] sm:$0xff]
      %v576 = vld [vmem:[%s7 + $0x40] sm:$0xff]
      %v577 = vld [vmem:[%s7 + $0x48] sm:$0xff]
      %v578 = vld [vmem:[%s7 + $0x50] sm:$0xff]
      %v579 = vld [vmem:[%s7 + $0x58] sm:$0xff]
      %v580 = vld [vmem:[%s7 + $0x60] sm:$0xff]
      %v581 = vld [vmem:[%s7 + $0x68] sm:$0xff]
      %v582 = vld [vmem:[%s7 + $0x70] sm:$0xff]
      %v583 = vld [vmem:[%s7 + $0x78] sm:$0xff]
      %v584 = vld [vmem:[%s7 + $0x80] sm:$0xff]
      %v585 = vld [vmem:[%s7 + $0x88] sm:$0xff]
      %v586 = vld [vmem:[%s7 + $0x90] sm:$0xff]
      %v587 = vld [vmem:[%s7 + $0x98] sm:$0xff]
      %v588 = vld [vmem:[%s7 + $0xa0] sm:$0xff]
      %v589 = vld [vmem:[%s7 + $0xa8] sm:$0xff]
      %v590 = vld [vmem:[%s7 + $0xb0] sm:$0xff]
      %v591 = vld [vmem:[%s7 + $0xb8] sm:$0xff]
      %v592 = vld [vmem:[%s7 + $0xc0] sm:$0xff]
      %v593 = vld [vmem:[%s7 + $0xc8] sm:$0xff]
      %v594 = vld [vmem:[%s7 + $0xd0] sm:$0xff]
      %v595 = vld [vmem:[%s7 + $0xd8] sm:$0xff]
      %v596 = vld [vmem:[%s7 + $0xe0] sm:$0xff]
      %v597 = vld [vmem:[%s7 + $0xe8] sm:$0xff]
      %v598 = vld [vmem:[%s7 + $0xf0] sm:$0xff]
      %v599 = vld [vmem:[%s7 + $0xf8] sm:$0xff]
      %v600 = vld [vmem:[%s7 + $0x100] sm:$0xff]
      %v601 = vld [vmem:[%s7 + $0x108] sm:$0xff]
      %v602 = vld [vmem:[%s7 + $0x110] sm:$0xff]
      %v603 = vld [vmem:[%s7 + $0x118] sm:$0xff]
      %v604 = vld [vmem:[%s7 + $0x120] sm:$0xff]
      %v605 = vld [vmem:[%s7 + $0x128] sm:$0xff]
      %v606 = vld [vmem:[%s7 + $0x130] sm:$0xff]
      %v607 = vld [vmem:[%s7 + $0x138] sm:$0xff]
      %v608 = vld [vmem:[%s7 + $0x140] sm:$0xff]
      %v609 = vld [vmem:[%s7 + $0x148] sm:$0xff]
      %v610 = vld [vmem:[%s7 + $0x150] sm:$0xff]
      %v611 = vld [vmem:[%s7 + $0x158] sm:$0xff]
      %v612 = vld [vmem:[%s7 + $0x160] sm:$0xff]
      %v613 = vld [vmem:[%s7 + $0x168] sm:$0xff]
      %v614 = vld [vmem:[%s7 + $0x170] sm:$0xff]
      %v615 = vld [vmem:[%s7 + $0x178] sm:$0xff]
      %v616 = vld [vmem:[%s8] sm:$0x3]
      %v618 = vlaneseq
      %v619 = vshrl.u32 %v618, 7
      %v620 = vsub.s32 0, %v619
      %v621 = vrot.slane %v616, %v620
      %v622 = vlaneseq
      %v623 = vshrl.u32 %v622, 7
      %v624 = vsub.s32 1, %v623
      %v625 = vrot.slane %v616, %v624
      %v676 = vunpack.c.l.b16 %v568
      %v677 = vunpack.c.h.b16 %v568
      %v678 = vunpack.c.l.b16 %v569
      %v679 = vunpack.c.h.b16 %v569
      %v680 = vunpack.c.l.b16 %v570
      %v681 = vunpack.c.h.b16 %v570
      %v682 = vunpack.c.l.b16 %v571
      %v683 = vunpack.c.h.b16 %v571
      %v684 = vunpack.c.l.b16 %v572
      %v685 = vunpack.c.h.b16 %v572
      %v686 = vunpack.c.l.b16 %v573
      %v687 = vunpack.c.h.b16 %v573
      %v688 = vunpack.c.l.b16 %v574
      %v689 = vunpack.c.h.b16 %v574
      %v690 = vunpack.c.l.b16 %v575
      %v691 = vunpack.c.h.b16 %v575
      %v692 = vunpack.c.l.b16 %v576
      %v693 = vunpack.c.h.b16 %v576
      %v694 = vunpack.c.l.b16 %v577
      %v695 = vunpack.c.h.b16 %v577
      %v696 = vunpack.c.l.b16 %v578
      %v697 = vunpack.c.h.b16 %v578
      %v698 = vunpack.c.l.b16 %v579
      %v699 = vunpack.c.h.b16 %v579
      %v700 = vunpack.c.l.b16 %v580
      %v701 = vunpack.c.h.b16 %v580
      %v702 = vunpack.c.l.b16 %v581
      %v703 = vunpack.c.h.b16 %v581
      %v704 = vunpack.c.l.b16 %v582
      %v705 = vunpack.c.h.b16 %v582
      %v706 = vunpack.c.l.b16 %v583
      %v707 = vunpack.c.h.b16 %v583
      %v708 = vunpack.c.l.b16 %v584
      %v709 = vunpack.c.h.b16 %v584
      %v710 = vunpack.c.l.b16 %v585
      %v711 = vunpack.c.h.b16 %v585
      %v712 = vunpack.c.l.b16 %v586
      %v713 = vunpack.c.h.b16 %v586
      %v714 = vunpack.c.l.b16 %v587
      %v715 = vunpack.c.h.b16 %v587
      %v716 = vunpack.c.l.b16 %v588
      %v717 = vunpack.c.h.b16 %v588
      %v718 = vunpack.c.l.b16 %v589
      %v719 = vunpack.c.h.b16 %v589
      %v720 = vunpack.c.l.b16 %v590
      %v721 = vunpack.c.h.b16 %v590
      %v722 = vunpack.c.l.b16 %v591
      %v723 = vunpack.c.h.b16 %v591
      %v724 = vunpack.c.l.b16 %v592
      %v725 = vunpack.c.h.b16 %v592
      %v726 = vunpack.c.l.b16 %v593
      %v727 = vunpack.c.h.b16 %v593
      %v728 = vunpack.c.l.b16 %v594
      %v729 = vunpack.c.h.b16 %v594
      %v730 = vunpack.c.l.b16 %v595
      %v731 = vunpack.c.h.b16 %v595
      %v732 = vunpack.c.l.b16 %v596
      %v733 = vunpack.c.h.b16 %v596
      %v734 = vunpack.c.l.b16 %v597
      %v735 = vunpack.c.h.b16 %v597
      %v736 = vunpack.c.l.b16 %v598
      %v737 = vunpack.c.h.b16 %v598
      %v738 = vunpack.c.l.b16 %v599
      %v739 = vunpack.c.h.b16 %v599
      %v740 = vunpack.c.l.b16 %v600
      %v741 = vunpack.c.h.b16 %v600
      %v742 = vunpack.c.l.b16 %v601
      %v743 = vunpack.c.h.b16 %v601
      %v744 = vunpack.c.l.b16 %v602
      %v745 = vunpack.c.h.b16 %v602
      %v746 = vunpack.c.l.b16 %v603
      %v747 = vunpack.c.h.b16 %v603
      %v748 = vunpack.c.l.b16 %v604
      %v749 = vunpack.c.h.b16 %v604
      %v750 = vunpack.c.l.b16 %v605
      %v751 = vunpack.c.h.b16 %v605
      %v752 = vunpack.c.l.b16 %v606
      %v753 = vunpack.c.h.b16 %v606
      %v754 = vunpack.c.l.b16 %v607
      %v755 = vunpack.c.h.b16 %v607
      %v756 = vunpack.c.l.b16 %v608
      %v757 = vunpack.c.h.b16 %v608
      %v758 = vunpack.c.l.b16 %v609
      %v759 = vunpack.c.h.b16 %v609
      %v760 = vunpack.c.l.b16 %v610
      %v761 = vunpack.c.h.b16 %v610
      %v762 = vunpack.c.l.b16 %v611
      %v763 = vunpack.c.h.b16 %v611
      %v764 = vunpack.c.l.b16 %v612
      %v765 = vunpack.c.h.b16 %v612
      %v766 = vunpack.c.l.b16 %v613
      %v767 = vunpack.c.h.b16 %v613
      %v768 = vunpack.c.l.b16 %v614
      %v769 = vunpack.c.h.b16 %v614
      %v770 = vunpack.c.l.b16 %v615
      %v771 = vunpack.c.h.b16 %v615
      %v772 = vpack.c.b16 %v678, %v676
      %v773 = vpack.c.b16 %v679, %v677
      %v774 = vpack.c.b16 %v682, %v680
      %v775 = vpack.c.b16 %v683, %v681
      %v776 = vpack.c.b16 %v686, %v684
      %v777 = vpack.c.b16 %v687, %v685
      %v778 = vpack.c.b16 %v690, %v688
      %v779 = vpack.c.b16 %v691, %v689
      %v780 = vpack.c.b16 %v694, %v692
      %v781 = vpack.c.b16 %v695, %v693
      %v782 = vpack.c.b16 %v698, %v696
      %v783 = vpack.c.b16 %v699, %v697
      %v784 = vpack.c.b16 %v702, %v700
      %v785 = vpack.c.b16 %v703, %v701
      %v786 = vpack.c.b16 %v706, %v704
      %v787 = vpack.c.b16 %v707, %v705
      %v788 = vpack.c.b16 %v710, %v708
      %v789 = vpack.c.b16 %v711, %v709
      %v790 = vpack.c.b16 %v714, %v712
      %v791 = vpack.c.b16 %v715, %v713
      %v792 = vpack.c.b16 %v718, %v716
      %v793 = vpack.c.b16 %v719, %v717
      %v794 = vpack.c.b16 %v722, %v720
      %v795 = vpack.c.b16 %v723, %v721
      %v796 = vpack.c.b16 %v726, %v724
      %v797 = vpack.c.b16 %v727, %v725
      %v798 = vpack.c.b16 %v730, %v728
      %v799 = vpack.c.b16 %v731, %v729
      %v800 = vpack.c.b16 %v734, %v732
      %v801 = vpack.c.b16 %v735, %v733
      %v802 = vpack.c.b16 %v738, %v736
      %v803 = vpack.c.b16 %v739, %v737
      %v804 = vpack.c.b16 %v742, %v740
      %v805 = vpack.c.b16 %v743, %v741
      %v806 = vpack.c.b16 %v746, %v744
      %v807 = vpack.c.b16 %v747, %v745
      %v808 = vpack.c.b16 %v750, %v748
      %v809 = vpack.c.b16 %v751, %v749
      %v810 = vpack.c.b16 %v754, %v752
      %v811 = vpack.c.b16 %v755, %v753
      %v812 = vpack.c.b16 %v758, %v756
      %v813 = vpack.c.b16 %v759, %v757
      %v814 = vpack.c.b16 %v762, %v760
      %v815 = vpack.c.b16 %v763, %v761
      %v816 = vpack.c.b16 %v766, %v764
      %v817 = vpack.c.b16 %v767, %v765
      %v818 = vpack.c.b16 %v770, %v768
      %v819 = vpack.c.b16 %v771, %v769
      %868 = vmatprep.subr.bf16.mxu0 %v773
      %869 = vmatpush1.bf16.msra.mxu0 %v772
      %870 = vmatprep.subr.bf16.mxu0 %v775
      %871 = vmatpush1.bf16.msra.mxu0 %v774
      %872 = vmatprep.subr.bf16.mxu0 %v777
      %873 = vmatpush1.bf16.msra.mxu0 %v776
      %874 = vmatprep.subr.bf16.mxu0 %v779
      %875 = vmatpush1.bf16.msra.mxu0 %v778
      %876 = vmatprep.subr.bf16.mxu0 %v781
      %877 = vmatpush1.bf16.msra.mxu0 %v780
      %878 = vmatprep.subr.bf16.mxu0 %v783
      %879 = vmatpush1.bf16.msra.mxu0 %v782
      %880 = vmatprep.subr.bf16.mxu0 %v785
      %881 = vmatpush1.bf16.msra.mxu0 %v784
      %882 = vmatprep.subr.bf16.mxu0 %v787
      %883 = vmatpush1.bf16.msra.mxu0 %v786
      %884 = vmatprep.subr.bf16.mxu0 %v789
      %885 = vmatpush1.bf16.msra.mxu0 %v788
      %886 = vmatprep.subr.bf16.mxu0 %v791
      %887 = vmatpush1.bf16.msra.mxu0 %v790
      %888 = vmatprep.subr.bf16.mxu0 %v793
      %889 = vmatpush1.bf16.msra.mxu0 %v792
      %890 = vmatprep.subr.bf16.mxu0 %v795
      %891 = vmatpush1.bf16.msra.mxu0 %v794
      %892 = vmatprep.subr.bf16.mxu0 %v797
      %893 = vmatpush1.bf16.msra.mxu0 %v796
      %894 = vmatprep.subr.bf16.mxu0 %v799
      %895 = vmatpush1.bf16.msra.mxu0 %v798
      %896 = vmatprep.subr.bf16.mxu0 %v801
      %897 = vmatpush1.bf16.msra.mxu0 %v800
      %898 = vmatprep.subr.bf16.mxu0 %v803
      %899 = vmatpush1.bf16.msra.mxu0 %v802
      %900 = vmatprep.mubr.bf16.mxu0 %v566
      %901 = vmatmul.mubr.bf16.gmra.mrb[0].mxu0 %v565
      %v902 = vpop.f32.mrb[0].mxu0
      %v903 = vadd.f32 %v621, %v902
      %v904 = vpop.f32.mrb[0].mxu0
      %v905 = vadd.f32 %v625, %v904
      %v906 = vpop.f32.mrb[0].mxu0
      %v907 = vadd.f32 %v621, %v906
      %v908 = vpop.f32.mrb[0].mxu0
      %v909 = vadd.f32 %v625, %v908
      %910 = vdwg.mxu0
      %911 = vmatprep.subr.bf16.mxu0 %v805
      %912 = vmatpush1.bf16.msra.mxu0 %v804
      %913 = vmatprep.subr.bf16.mxu0 %v807
      %914 = vmatpush1.bf16.msra.mxu0 %v806
      %915 = vmatprep.subr.bf16.mxu0 %v809
      %916 = vmatpush1.bf16.msra.mxu0 %v808
      %917 = vmatprep.subr.bf16.mxu0 %v811
      %918 = vmatpush1.bf16.msra.mxu0 %v810
      %919 = vmatprep.subr.bf16.mxu0 %v813
      %920 = vmatpush1.bf16.msra.mxu0 %v812
      %921 = vmatprep.subr.bf16.mxu0 %v815
      %922 = vmatpush1.bf16.msra.mxu0 %v814
      %923 = vmatprep.subr.bf16.mxu0 %v817
      %924 = vmatpush1.bf16.msra.mxu0 %v816
      %925 = vmatprep.subr.bf16.mxu0 %v819
      %926 = vmatpush1.bf16.msra.mxu0 %v818
      %927 = vmatprep.subr.bf16.mxu0 0
      %928 = vmatpush1.bf16.msra.mxu0 0
      %929 = vmatprep.subr.bf16.mxu0 0
      %930 = vmatpush1.bf16.msra.mxu0 0
      %931 = vmatprep.subr.bf16.mxu0 0
      %932 = vmatpush1.bf16.msra.mxu0 0
      %933 = vmatprep.subr.bf16.mxu0 0
      %934 = vmatpush1.bf16.msra.mxu0 0
      %935 = vmatprep.subr.bf16.mxu0 0
      %936 = vmatpush1.bf16.msra.mxu0 0
      %937 = vmatprep.subr.bf16.mxu0 0
      %938 = vmatpush1.bf16.msra.mxu0 0
      %939 = vmatprep.subr.bf16.mxu0 0
      %940 = vmatpush1.bf16.msra.mxu0 0
      %941 = vmatprep.subr.bf16.mxu0 0
      %942 = vmatpush1.bf16.msra.mxu0 0
      %943 = vmatprep.mubr.bf16.mxu0 0
      %944 = vmatmul.mubr.bf16.gmra.mrb[0].mxu0 %v567
      %v945 = vpop.f32.mrb[0].mxu0
      %v946 = vadd.f32 %v903, %v945
      %v947 = vpop.f32.mrb[0].mxu0
      %v948 = vadd.f32 %v905, %v947
      %v949 = vpop.f32.mrb[0].mxu0
      %v950 = vadd.f32 %v907, %v949
      %v951 = vpop.f32.mrb[0].mxu0
      %v952 = vadd.f32 %v909, %v951
      %953 = vdwg.mxu0
      %v954 = vld [vmem:[%s340] sm:$0xff]
      %v955 = vld [vmem:[%s340 + $0x8] sm:$0xff]
      %v956 = vld [vmem:[%s2] sm:$0x1]
      %v958 = vlaneseq
      %v959 = vshrl.u32 %v958, 7
      %v960 = vsub.s32 0, %v959
      %v961 = vrot.slane %v956, %v960
      %v963 = vsub.f32 %v954, %v961
      %v964 = vsub.f32 %v955, %v961
      %v965 = vld [vmem:[%s3] sm:$0x1]
      %v967 = vlaneseq
      %v968 = vshrl.u32 %v967, 7
      %v969 = vsub.s32 0, %v968
      %v970 = vrot.slane %v965, %v969
      %v972 = vmul.f32 %v963, %v970
      %v973 = vmul.f32 %v964, %v970
      %v974 = vadd.f32 %v946, 1.0
      %v975 = vadd.f32 %v950, 1.0
      %v976 = vmul.f32 %v972, %v974
      %v977 = vmul.f32 %v973, %v975
      %v978 = vadd.f32 %v976, %v948
      %v979 = vadd.f32 %v977, %v952
      %980 = vst [vmem:[%s349] sm:$0xff] %v978
      %981 = vst [vmem:[%s349 + $0x8] sm:$0xff] %v979
      %p982 = scmp.lt.s32.totalorder %s20, 1
      %s983 = scalar_select %p982, %s20, 1
      %s984 = smul.addr %s983, 2
      %s985 = smul.addr %s984, 8
      %s986 = scalar_lea.vmem %s9, %s985
      // Predicated region
      $region57: #{spade_forward.1} parent=55 // pred_check
        %p987 = pneg %p237
      $region58: #{spade_forward.1} parent=55 // pred_check_branch
        %989 = sbr.rel (%p987) target = $region60
      $region59: #{spade_forward.1} parent=55 // pred_region
        _
      $region60: #{spade_forward.1} parent=55 // pred_fallthru
        _
    $region56: #{spade_forward.1} parent=5 // pred_fallthru
      _
    %p990 = scmp.le.s32.totalorder 2, %s15
    // Predicated region
    $region61: #{spade_forward.1} parent=5 // pred_check
      %p991 = pneg %p990
    $region62: #{spade_forward.1} parent=5 // pred_check_branch
      %993 = sbr.rel (%p991) target = $region64
    $region63: #{spade_forward.1} parent=5 // pred_region
      %s994 = ssub.s32 %s15, 2
      // Predicated region
      $region65: #{spade_forward.1} parent=63 // pred_check
        %p995 = pneg %p243
      $region66: #{spade_forward.1} parent=63 // pred_check_branch
        %997 = sbr.rel (%p995) target = $region68
      $region67: #{spade_forward.1} parent=63 // pred_region
        %p998 = scmp.lt.s32.totalorder %s21, 1
        %s999 = scalar_select %p998, %s21, 1
        %s1000 = smul.addr %s999, 2
        %s1001 = smul.addr %s1000, 8
        %s1002 = scalar_lea.vmem %s9, %s1001
      $region68: #{spade_forward.1} parent=63 // pred_fallthru
        _
    $region64: #{spade_forward.1} parent=5 // pred_fallthru
      _
  $region6: #{spade_forward.1} parent=0 // loop_footer
    %s19 = sadd.s32 1, %s15
  $region7: #{spade_forward.1} parent=0 // loop_footer_branch
    %14 = sbr.rel target = $region3
  $region8: #{spade_forward.1} parent=0 // loop_exit
    _

</llo_original>
